<compile_context>
chip_gen: v6e
topology: v6e:2x2x1
jax: 0.10.0
libtpu: 0.0.40
codegen_flags: <defaults>
</compile_context>

<pallas_src>
import functools
import math

import jax
import jax.numpy as jnp
from jax.experimental import pallas as pl
from jax.experimental.pallas import tpu as pltpu

_INV_SQRT2 = 1.0 / math.sqrt(2.0)
_LN_EPS = 1e-5


def _round_up(x, m):
    return ((x + m - 1) // m) * m


def _vmem_cap_bytes():
    try:
        return int(pltpu.get_tpu_info().vmem_capacity_bytes)
    except Exception:
        return 64 << 20   # conservative fallback: v7x per-TensorCore VMEM


def _pad2(a, r, c):
    if a.shape == (r, c):      # already aligned -> no extra HBM copy
        return a
    return jnp.pad(a, ((0, r - a.shape[0]), (0, c - a.shape[1])))


def ffn_kernel(x_ref, w1_ref, b1_ref, g_ref, be_ref, w2_ref, b2_ref, o_ref,
               *, d_mid_true, n_pad_mid, tanh_gelu, matmul_dtype):
    # x_ref: (TM, D_in_p), w1_ref: (D_in_p, D_mid_p), b1/gamma/beta: (1, D_mid_p)
    # w2_ref: (D_mid_p, D_out_p), b2_ref: (1, D_out_p), o_ref: (TM, D_out_p)
    mm_dtype = matmul_dtype if matmul_dtype is not None else w1_ref.dtype

    # fc1 (+ bias) -> f32 accumulator (MXU-native path when mm_dtype is bf16).
    x = x_ref[...].astype(mm_dtype)
    h = jnp.dot(x, w1_ref[...].astype(mm_dtype),
                preferred_element_type=jnp.float32)
    h = h + b1_ref[...].astype(jnp.float32)

    # GELU: exact erf form (VPU polynomial) by default; tanh form (EUP) optional.
    if tanh_gelu:
        h = jax.nn.gelu(h, approximate=True)
    else:
        h = h * 0.5 * (1.0 + jax.lax.erf(h * _INV_SQRT2))

    # LayerNorm over the true intermediate width, two-pass centered variance.
    # Padded columns of h are exactly zero (zero-padded W1 cols / b1), so the
    # mean sum is exact; the centered sum-of-squares over-counts n_pad * mean^2
    # for the padded columns, which is subtracted out exactly below.
    inv_n = 1.0 / d_mid_true
    mean = jnp.sum(h, axis=-1, keepdims=True) * inv_n
    diff = h - mean
    ssq = jnp.sum(diff * diff, axis=-1, keepdims=True)
    if n_pad_mid:
        ssq = ssq - float(n_pad_mid) * (mean * mean)
    var = ssq * inv_n
    h = diff * jax.lax.rsqrt(var + _LN_EPS)
    # Padded gamma/beta columns are zero, so padded columns of h become zero
    # again and (with zero-padded W2 rows) never leak into fc2.
    h = h * g_ref[...].astype(jnp.float32) + be_ref[...].astype(jnp.float32)

    # fc2 (+ bias).
    out = jnp.dot(h.astype(mm_dtype), w2_ref[...].astype(mm_dtype),
                  preferred_element_type=jnp.float32)
    out = out + b2_ref[...].astype(jnp.float32)
    o_ref[...] = out.astype(o_ref.dtype)


def prepare_params(w1, b1, gamma, beta, w2, b2):
    """Zero-pad all feature dims to multiples of 128 ONCE (outside ffn_layer),
    so no padded weight copies are re-materialized in HBM on every call.
    Returns (padded_params, (d_in, d_mid, d_out))."""
    d_in, d_mid = w1.shape
    d_out = w2.shape[1]
    d_in_p = _round_up(d_in, 128)
    d_mid_p = _round_up(d_mid, 128)
    d_out_p = _round_up(d_out, 128)
    padded = (_pad2(w1, d_in_p, d_mid_p), _pad2(b1, 1, d_mid_p),
              _pad2(gamma, 1, d_mid_p), _pad2(beta, 1, d_mid_p),
              _pad2(w2, d_mid_p, d_out_p), _pad2(b2, 1, d_out_p))
    return padded, (d_in, d_mid, d_out)


def ffn_layer(x, w1, b1, gamma, beta, w2, b2, *, true_dims=None, tile_m=256,
              tanh_gelu=False, matmul_dtype=None):
    """x: (rows, d_in); weights stored pre-transposed as (in, out).
    Pass pre-padded weights from prepare_params() plus true_dims to avoid any
    per-call weight padding."""
    rows = x.shape[0]
    if true_dims is None:
        d_in, d_mid, d_out = w1.shape[0], w1.shape[1], w2.shape[1]
    else:
        d_in, d_mid, d_out = true_dims

    d_in_p = _round_up(d_in, 128)
    d_mid_p = _round_up(d_mid, 128)
    d_out_p = _round_up(d_out, 128)

    # Weight padding is a no-op when prepare_params() was used.
    w1p = _pad2(w1, d_in_p, d_mid_p)
    b1p = _pad2(b1, 1, d_mid_p)
    gp = _pad2(gamma, 1, d_mid_p)
    bep = _pad2(beta, 1, d_mid_p)
    w2p = _pad2(w2, d_mid_p, d_out_p)
    b2p = _pad2(b2, 1, d_out_p)

    in_bytes = jnp.dtype(x.dtype).itemsize
    w_bytes = jnp.dtype(w1p.dtype).itemsize
    weight_bytes = (d_in_p * d_mid_p + d_mid_p * d_out_p) * w_bytes  # Buffered(1)

    def est(tm):
        return (2 * tm * d_in_p * in_bytes           # x tile (double-buffered)
                + 2 * tm * d_out_p * in_bytes        # out tile (double-buffered)
                + weight_bytes                       # W1+W2 (single-buffered)
                + (3 * d_mid_p + d_out_p) * 4        # b1 / gamma / beta / b2
                + 3 * tm * d_mid_p * 4)              # live f32 intermediates

    cap = _vmem_cap_bytes()
    budget = cap - (8 << 20)                         # generation-aware ceiling

    # Row-tile selection: start big, shrink to fit the per-generation budget,
    # then guarantee >= 2 grid steps so both TensorCores (v7x megacore) get
    # work via dimension_semantics=("parallel",).
    tile_m = max(8, min(_round_up(tile_m, 8), _round_up(rows, 8)))
    while tile_m > 8 and est(tile_m) > budget:
        tile_m = max(8, _round_up(tile_m // 2, 8))
    rows_p = _round_up(rows, tile_m)
    while rows_p // tile_m < 2 and tile_m > 8:
        tile_m = max(8, _round_up(tile_m // 2, 8))
        rows_p = _round_up(rows, tile_m)

    xp = x
    if x.shape != (rows_p, d_in_p):
        xp = jnp.pad(x, ((0, rows_p - rows), (0, d_in_p - x.shape[1])))

    vmem_limit = int(min(max(est(tile_m) + (8 << 20), 32 << 20), budget))

    kernel = functools.partial(
        ffn_kernel, d_mid_true=float(d_mid), n_pad_mid=d_mid_p - d_mid,
        tanh_gelu=tanh_gelu, matmul_dtype=matmul_dtype)

    resident = pl.Buffered(1)   # constant index_map -> one VMEM copy, one DMA

    out_p = pl.pallas_call(
        kernel,
        out_shape=jax.ShapeDtypeStruct((rows_p, d_out_p), x.dtype),
        grid_spec=pltpu.PrefetchScalarGridSpec(
            num_scalar_prefetch=0,
            grid=(rows_p // tile_m,),
            in_specs=[
                pl.BlockSpec((tile_m, d_in_p), lambda i: (i, 0)),     # x (row-tiled)
                pl.BlockSpec((d_in_p, d_mid_p), lambda i: (0, 0),
                             pipeline_mode=resident),                 # W1
                pl.BlockSpec((1, d_mid_p), lambda i: (0, 0),
                             pipeline_mode=resident),                 # b1
                pl.BlockSpec((1, d_mid_p), lambda i: (0, 0),
                             pipeline_mode=resident),                 # gamma
                pl.BlockSpec((1, d_mid_p), lambda i: (0, 0),
                             pipeline_mode=resident),                 # beta
                pl.BlockSpec((d_mid_p, d_out_p), lambda i: (0, 0),
                             pipeline_mode=resident),                 # W2
                pl.BlockSpec((1, d_out_p), lambda i: (0, 0),
                             pipeline_mode=resident),                 # b2
            ],
            out_specs=pl.BlockSpec((tile_m, d_out_p), lambda i: (i, 0)),
        ),
        compiler_params=pltpu.CompilerParams(
            dimension_semantics=("parallel",),
            vmem_limit_bytes=vmem_limit),
    )(xp, w1p, b1p, gp, bep, w2p, b2p)

    if (rows_p, d_out_p) != (rows, d_out):
        out_p = out_p[:rows, :d_out]
    return out_p


def init_params(key, input_dim, intermediate_dim, output_dim):
    """Deterministic init mirroring nn.Linear / nn.LayerNorm shapes."""
    k1, k2, k3, k4 = jax.random.split(key, 4)
    bound1 = 1.0 / math.sqrt(input_dim)
    bound2 = 1.0 / math.sqrt(intermediate_dim)
    # weights stored pre-transposed: (in_features, out_features)
    w1 = jax.random.uniform(k1, (input_dim, intermediate_dim),
                            jnp.float32, -bound1, bound1)
    b1 = jax.random.uniform(k2, (1, intermediate_dim),
                            jnp.float32, -bound1, bound1)
    w2 = jax.random.uniform(k3, (intermediate_dim, output_dim),
                            jnp.float32, -bound2, bound2)
    b2 = jax.random.uniform(k4, (1, output_dim),
                            jnp.float32, -bound2, bound2)
    gamma = jnp.ones((1, intermediate_dim), jnp.float32)   # nn.LayerNorm weight
    beta = jnp.zeros((1, intermediate_dim), jnp.float32)   # nn.LayerNorm bias
    return w1, b1, gamma, beta, w2, b2


def reference(x, w1, b1, gamma, beta, w2, b2):
    h = x @ w1 + b1
    h = h * 0.5 * (1.0 + jax.lax.erf(h / math.sqrt(2.0)))
    mean = jnp.mean(h, axis=-1, keepdims=True)
    var = jnp.mean(jnp.square(h - mean), axis=-1, keepdims=True)
    h = (h - mean) / jnp.sqrt(var + _LN_EPS) * gamma + beta
    return h @ w2 + b2


if __name__ == "__main__":
    batch, seq = 2, 8
    input_dim, intermediate_dim, output_dim = 32, 64, 32

    key = jax.random.PRNGKey(0)
    kx, kp = jax.random.split(key)
    x = jax.random.normal(kx, (batch, seq, input_dim), jnp.float32)
    params = init_params(kp, input_dim, intermediate_dim, output_dim)
    padded, dims = prepare_params(*params)   # pad weights once, outside the call

    x2d = x.reshape(batch * seq, input_dim)       # rows = batch*seq
    ref = reference(x2d, *params)

    # --- exact f32 path ---
    out = jax.block_until_ready(ffn_layer(x2d, *padded, true_dims=dims))
    out3d = out.reshape(batch, seq, output_dim)
    assert out3d.shape == (batch, seq, output_dim)
    assert jnp.allclose(out, ref, atol=1e-4, rtol=1e-4)

    # --- bf16 weights/activations (native MXU dtype), f32 accumulation ---
    w1p, b1p, gp, bep, w2p, b2p = padded
    out_bf16 = jax.block_until_ready(
        ffn_layer(x2d.astype(jnp.bfloat16),
                  w1p.astype(jnp.bfloat16), b1p, gp, bep,
                  w2p.astype(jnp.bfloat16), b2p, true_dims=dims))
    assert out_bf16.shape == (batch * seq, output_dim)
    assert jnp.allclose(out_bf16.astype(jnp.float32), ref, atol=1e-1, rtol=1e-1)

    # --- f32 storage, bf16 matmul operands (MXU-native path for f32 weights) ---
    out_mx = jax.block_until_ready(
        ffn_layer(x2d, *padded, true_dims=dims, matmul_dtype=jnp.bfloat16))
    assert jnp.allclose(out_mx, ref, atol=1e-1, rtol=1e-1)

    print("KERNEL_OK")
</pallas_src>

<mosaic_0001>
module attributes {stable_mosaic.version = 11 : i64} {
  func.func @ffn_kernel(%arg0: i32, %arg1: memref<8x128xf32, #tpu.memory_space<vmem>>, %arg2: memref<128x128xf32, #tpu.memory_space<vmem>>, %arg3: memref<1x128xf32, #tpu.memory_space<vmem>>, %arg4: memref<1x128xf32, #tpu.memory_space<vmem>>, %arg5: memref<1x128xf32, #tpu.memory_space<vmem>>, %arg6: memref<128x128xf32, #tpu.memory_space<vmem>>, %arg7: memref<1x128xf32, #tpu.memory_space<vmem>>, %arg8: memref<8x128xf32, #tpu.memory_space<vmem>>) attributes {dimension_semantics = [#tpu.dimension_semantics<parallel>], iteration_bounds = array<i64: 2>, scalar_prefetch = 0 : i64, scratch_operands = 0 : i64, tpu.core_type = #tpu.core_type<tc>, window_params = [{transform_indices = @transform_0, window_bounds = array<i64: 8, 128>}, {pipeline_mode = #tpu.pipeline_mode<synchronous>, transform_indices = @transform_1, window_bounds = array<i64: 128, 128>}, {pipeline_mode = #tpu.pipeline_mode<synchronous>, transform_indices = @transform_2, window_bounds = array<i64: 1, 128>}, {pipeline_mode = #tpu.pipeline_mode<synchronous>, transform_indices = @transform_3, window_bounds = array<i64: 1, 128>}, {pipeline_mode = #tpu.pipeline_mode<synchronous>, transform_indices = @transform_4, window_bounds = array<i64: 1, 128>}, {pipeline_mode = #tpu.pipeline_mode<synchronous>, transform_indices = @transform_5, window_bounds = array<i64: 128, 128>}, {pipeline_mode = #tpu.pipeline_mode<synchronous>, transform_indices = @transform_6, window_bounds = array<i64: 1, 128>}, {transform_indices = @transform_7, window_bounds = array<i64: 8, 128>}]} {
    %c0 = arith.constant 0 : index
    %c0_0 = arith.constant 0 : index
    %0 = vector.load %arg1[%c0, %c0_0] : memref<8x128xf32, #tpu.memory_space<vmem>>, vector<8x128xf32>
    %c0_1 = arith.constant 0 : index
    %c0_2 = arith.constant 0 : index
    %1 = vector.load %arg2[%c0_1, %c0_2] : memref<128x128xf32, #tpu.memory_space<vmem>>, vector<128x128xf32>
    %cst = arith.constant dense<0.000000e+00> : vector<8x128xf32>
    %2 = tpu.matmul %0, %1, %cst {dimension_numbers = #tpu.dot_dimension_numbers<[1], [0], [0], [1], [0, 0, 1, 1], [], []>} : vector<8x128xf32>, vector<128x128xf32>, vector<8x128xf32> -> vector<8x128xf32>
    %c0_3 = arith.constant 0 : index
    %c0_4 = arith.constant 0 : index
    %3 = vector.load %arg3[%c0_3, %c0_4] : memref<1x128xf32, #tpu.memory_space<vmem>>, vector<1x128xf32>
    %4 = vector.broadcast %3 : vector<1x128xf32> to vector<8x128xf32>
    %5 = arith.addf %2, %4 : vector<8x128xf32>
    %cst_5 = arith.constant 5.000000e-01 : f32
    %6 = vector.broadcast %cst_5 : f32 to vector<8x128xf32>
    %7 = arith.mulf %5, %6 : vector<8x128xf32>
    %cst_6 = arith.constant 0.707106769 : f32
    %8 = vector.broadcast %cst_6 : f32 to vector<8x128xf32>
    %9 = arith.mulf %5, %8 : vector<8x128xf32>
    %10 = math.erf %9 : vector<8x128xf32>
    %cst_7 = arith.constant 1.000000e+00 : f32
    %11 = vector.broadcast %cst_7 : f32 to vector<8x128xf32>
    %12 = arith.addf %11, %10 : vector<8x128xf32>
    %13 = arith.mulf %7, %12 : vector<8x128xf32>
    %cst_8 = arith.constant dense<0.000000e+00> : vector<8xf32>
    %14 = vector.multi_reduction <add>, %13, %cst_8 [1] : vector<8x128xf32> to vector<8xf32>
    %15 = vector.shape_cast %14 : vector<8xf32> to vector<8x1xf32>
    %cst_9 = arith.constant 1.562500e-02 : f32
    %16 = vector.broadcast %cst_9 : f32 to vector<8x1xf32>
    %17 = arith.mulf %15, %16 : vector<8x1xf32>
    %18 = vector.broadcast %17 : vector<8x1xf32> to vector<8x128xf32>
    %19 = arith.subf %13, %18 : vector<8x128xf32>
    %20 = arith.mulf %19, %19 : vector<8x128xf32>
    %cst_10 = arith.constant dense<0.000000e+00> : vector<8xf32>
    %21 = vector.multi_reduction <add>, %20, %cst_10 [1] : vector<8x128xf32> to vector<8xf32>
    %22 = vector.shape_cast %21 : vector<8xf32> to vector<8x1xf32>
    %23 = arith.mulf %17, %17 : vector<8x1xf32>
    %cst_11 = arith.constant 6.400000e+01 : f32
    %24 = vector.broadcast %cst_11 : f32 to vector<8x1xf32>
    %25 = arith.mulf %24, %23 : vector<8x1xf32>
    %26 = arith.subf %22, %25 : vector<8x1xf32>
    %cst_12 = arith.constant 1.562500e-02 : f32
    %27 = vector.broadcast %cst_12 : f32 to vector<8x1xf32>
    %28 = arith.mulf %26, %27 : vector<8x1xf32>
    %cst_13 = arith.constant 9.99999974E-6 : f32
    %29 = vector.broadcast %cst_13 : f32 to vector<8x1xf32>
    %30 = arith.addf %28, %29 : vector<8x1xf32>
    %31 = math.rsqrt %30 : vector<8x1xf32>
    %32 = vector.broadcast %31 : vector<8x1xf32> to vector<8x128xf32>
    %33 = arith.mulf %19, %32 : vector<8x128xf32>
    %c0_14 = arith.constant 0 : index
    %c0_15 = arith.constant 0 : index
    %34 = vector.load %arg4[%c0_14, %c0_15] : memref<1x128xf32, #tpu.memory_space<vmem>>, vector<1x128xf32>
    %35 = vector.broadcast %34 : vector<1x128xf32> to vector<8x128xf32>
    %36 = arith.mulf %33, %35 : vector<8x128xf32>
    %c0_16 = arith.constant 0 : index
    %c0_17 = arith.constant 0 : index
    %37 = vector.load %arg5[%c0_16, %c0_17] : memref<1x128xf32, #tpu.memory_space<vmem>>, vector<1x128xf32>
    %38 = vector.broadcast %37 : vector<1x128xf32> to vector<8x128xf32>
    %39 = arith.addf %36, %38 : vector<8x128xf32>
    %c0_18 = arith.constant 0 : index
    %c0_19 = arith.constant 0 : index
    %40 = vector.load %arg6[%c0_18, %c0_19] : memref<128x128xf32, #tpu.memory_space<vmem>>, vector<128x128xf32>
    %cst_20 = arith.constant dense<0.000000e+00> : vector<8x128xf32>
    %41 = tpu.matmul %39, %40, %cst_20 {dimension_numbers = #tpu.dot_dimension_numbers<[1], [0], [0], [1], [0, 0, 1, 1], [], []>} : vector<8x128xf32>, vector<128x128xf32>, vector<8x128xf32> -> vector<8x128xf32>
    %c0_21 = arith.constant 0 : index
    %c0_22 = arith.constant 0 : index
    %42 = vector.load %arg7[%c0_21, %c0_22] : memref<1x128xf32, #tpu.memory_space<vmem>>, vector<1x128xf32>
    %43 = vector.broadcast %42 : vector<1x128xf32> to vector<8x128xf32>
    %44 = arith.addf %41, %43 : vector<8x128xf32>
    %c0_23 = arith.constant 0 : index
    %c0_24 = arith.constant 0 : index
    %45 = vector.load %arg8[%c0_23, %c0_24] : memref<8x128xf32, #tpu.memory_space<vmem>>, vector<8x128xf32>
    tpu.vector_store %arg8[%c0_23, %c0_24], %44 {strides = array<i32>} : memref<8x128xf32, #tpu.memory_space<vmem>>, vector<8x128xf32>,
    return
  }
  func.func @transform_0(%arg0: i32) -> (i32, i32) {
    %c0_i32 = arith.constant 0 : i32
    %c0_i32_0 = arith.constant 0 : i32
    return %arg0, %c0_i32 : i32, i32
  }
  func.func @transform_1(%arg0: i32) -> (i32, i32) {
    %c0_i32 = arith.constant 0 : i32
    %c0_i32_0 = arith.constant 0 : i32
    %c0_i32_1 = arith.constant 0 : i32
    return %c0_i32, %c0_i32_0 : i32, i32
  }
  func.func @transform_2(%arg0: i32) -> (i32, i32) {
    %c0_i32 = arith.constant 0 : i32
    %c0_i32_0 = arith.constant 0 : i32
    %c0_i32_1 = arith.constant 0 : i32
    return %c0_i32, %c0_i32_0 : i32, i32
  }
  func.func @transform_3(%arg0: i32) -> (i32, i32) {
    %c0_i32 = arith.constant 0 : i32
    %c0_i32_0 = arith.constant 0 : i32
    %c0_i32_1 = arith.constant 0 : i32
    return %c0_i32, %c0_i32_0 : i32, i32
  }
  func.func @transform_4(%arg0: i32) -> (i32, i32) {
    %c0_i32 = arith.constant 0 : i32
    %c0_i32_0 = arith.constant 0 : i32
    %c0_i32_1 = arith.constant 0 : i32
    return %c0_i32, %c0_i32_0 : i32, i32
  }
  func.func @transform_5(%arg0: i32) -> (i32, i32) {
    %c0_i32 = arith.constant 0 : i32
    %c0_i32_0 = arith.constant 0 : i32
    %c0_i32_1 = arith.constant 0 : i32
    return %c0_i32, %c0_i32_0 : i32, i32
  }
  func.func @transform_6(%arg0: i32) -> (i32, i32) {
    %c0_i32 = arith.constant 0 : i32
    %c0_i32_0 = arith.constant 0 : i32
    %c0_i32_1 = arith.constant 0 : i32
    return %c0_i32, %c0_i32_0 : i32, i32
  }
  func.func @transform_7(%arg0: i32) -> (i32, i32) {
    %c0_i32 = arith.constant 0 : i32
    %c0_i32_0 = arith.constant 0 : i32
    return %arg0, %c0_i32 : i32, i32
  }
}

</mosaic_0001>

<llo_original>
// kernel: tpu_custom_call.1
$region0: #{tpu_custom_call.1}
  #allocation0 [shape = 'u32[]', space=smem, size = 0x4, offset = 0x4, fixed_abs, tag = 'smem constant byte address 0x4 - core index']
  #allocation1 [shape = 'u32[144,128]{1,0:T(1,128)}', space=vmem, size = 0x12000, scoped, tag = 'internal scratch']
  %s0 = inlined_call_operand.hbm [shape: f32[16,128], index: 0, kind: input, shape index: {}]
  %s1 = inlined_call_operand.hbm [shape: f32[128,128], index: 1, kind: input, shape index: {}]
  %s2 = inlined_call_operand.vmem [shape: f32[1,128], index: 2, kind: input, shape index: {}]
  %s3 = inlined_call_operand.vmem [shape: f32[1,128], index: 3, kind: input, shape index: {}]
  %s4 = inlined_call_operand.vmem [shape: f32[1,128], index: 4, kind: input, shape index: {}]
  %s5 = inlined_call_operand.hbm [shape: f32[128,128], index: 5, kind: input, shape index: {}]
  %s6 = inlined_call_operand.vmem [shape: f32[1,128], index: 6, kind: input, shape index: {}]
  %s7 = inlined_call_operand.hbm [shape: f32[16,128], index: 7, kind: output, shape index: {}]
  %s8 = sld [smem:[#allocation0]]
  $region73: #{tpu_custom_call.1} parent=0
    _
  %s10 = ssub.s32 1, %s8
  %s11 = scalar_select 0, %s10, %s8
  $region1: #{tpu_custom_call.1} parent=0
    #allocation2 [shape = 'u8[8192]{0}', space=vmem, size = 0x2000, scoped, tag = 'input window, operand 0']
    #allocation3 [shape = 's32[2]{0}', space=sflag, size = 0x8, scoped, tag = 'scoped memory for tpu_custom_call.1']
    #allocation4 [shape = 's32[2]{0}', space=sflag, size = 0x8, scoped, tag = 'scoped memory for tpu_custom_call.1']
    #allocation5 [shape = 'u8[65536]{0}', space=vmem, size = 0x10000, scoped, tag = 'input window, operand 1, single buffered']
    #allocation6 [shape = 's32[1]{0}', space=sflag, size = 0x4, scoped, tag = 'scoped memory for tpu_custom_call.1']
    #allocation7 [shape = 'u8[65536]{0}', space=vmem, size = 0x10000, scoped, tag = 'input window, operand 5, single buffered']
    #allocation8 [shape = 'u8[8192]{0}', space=vmem, size = 0x2000, scoped, tag = 'output window, operand 0']
    %12 = vsyncpa [#allocation3], 0
    %s13 = scalar_lea.sflag [#allocation3], 1
    %14 = vsyncpa %s13, 0
    %15 = vsyncpa [#allocation6], 0
    %16 = vsyncpa [#allocation4], 0
    %s17 = scalar_lea.sflag [#allocation4], 1
    %18 = vsyncpa %s17, 0
    loop: start=0, step=1, limit=4
    $region2: #{tpu_custom_call.1} parent=1 // loop_pre_header
      _
    $region3: #{tpu_custom_call.1} parent=1 // loop_header
      %s20 = sphi 0, %s24
      %p21 = scmp.ge.s32.totalorder %s20, 4
      %s30 = sphi 0, %s32
      %s33 = sphi 0, %s30
      %s34 = sphi 0, %s33
      %s50 = sphi 0, %s34
      %s54 = sphi 0, %s54
      %s56 = sphi 0, %s54
      %s57 = sphi 0, %s56
      %s71 = sphi 0, %s57
      %s75 = sphi 0, %s75
      %s77 = sphi 0, %s75
      %s78 = sphi 0, %s77
      %s92 = sphi 0, %s78
      %s96 = sphi 0, %s96
      %s98 = sphi 0, %s96
      %s99 = sphi 0, %s98
      %s113 = sphi 0, %s99
      %s117 = sphi 0, %s117
      %s119 = sphi 0, %s117
      %s120 = sphi 0, %s119
      %s134 = sphi 0, %s120
      %s138 = sphi 0, %s138
      %s140 = sphi 0, %s138
      %s141 = sphi 0, %s140
      %s155 = sphi 0, %s141
      %s159 = sphi 0, %s159
      %s161 = sphi 0, %s159
      %s162 = sphi 0, %s161
      %s176 = sphi 0, %s162
      %s182 = sphi 0, %s184
      %s185 = sphi 0, %s182
      %s186 = sphi 0, %s185
      %s202 = sphi 0, %s186
    $region4: #{tpu_custom_call.1} parent=1 // loop_header_branch
      %23 = sbr.rel (%p21) target = $region8
    $region5: #{tpu_custom_call.1} parent=1 // loop_body
      %s25 = ssub.s32 %s20, 1
      %s26 = ssub.s32 %s20, 2
      %s27 = sadd.s32 %s20, 1
      %s28 = ssub.s32 %s20, %s27
      %p29 = scmp.eq.s32.totalorder %s28, 0
      %s31 = sadd.s32 %s30, 1
      %s32 = scalar_select %p29, %s30, %s31
      %p35 = pneg %p29
      %p36 = scmp.eq.s32.totalorder %s20, 1
      %p37 = por %p35, %p36
      %p38 = scmp.ne.s32.totalorder %s30, %s33
      %p39 = scmp.eq.s32.totalorder %s20, 0
      %p40 = por %p38, %p39
      %p41 = scmp.ne.s32.totalorder %s30, %s33
      %p42 = scmp.eq.s32.totalorder %s25, 1
      %p43 = por %p41, %p42
      %p44 = scmp.ne.s32.totalorder %s33, %s34
      %p45 = scmp.eq.s32.totalorder %s25, 0
      %p46 = por %p44, %p45
      %p47 = scmp.ne.s32.totalorder %s33, %s34
      %p48 = scmp.eq.s32.totalorder %s26, 1
      %p49 = por %p47, %p48
      %p51 = scmp.ne.s32.totalorder %s34, %s50
      %p52 = scmp.eq.s32.totalorder %s26, 0
      %p53 = por %p51, %p52
      %s55 = sadd.s32 %s54, 1
      %p58 = scmp.eq.s32.totalorder %s20, 1
      %p59 = scmp.ne.s32.totalorder %s54, %s56
      %p60 = scmp.eq.s32.totalorder %s20, 0
      %p61 = por %p59, %p60
      %p62 = scmp.ne.s32.totalorder %s54, %s56
      %p63 = scmp.eq.s32.totalorder %s25, 1
      %p64 = por %p62, %p63
      %p65 = scmp.ne.s32.totalorder %s56, %s57
      %p66 = scmp.eq.s32.totalorder %s25, 0
      %p67 = por %p65, %p66
      %p68 = scmp.ne.s32.totalorder %s56, %s57
      %p69 = scmp.eq.s32.totalorder %s26, 1
      %p70 = por %p68, %p69
      %p72 = scmp.ne.s32.totalorder %s57, %s71
      %p73 = scmp.eq.s32.totalorder %s26, 0
      %p74 = por %p72, %p73
      %s76 = sadd.s32 %s75, 1
      %p79 = scmp.eq.s32.totalorder %s20, 1
      %p80 = scmp.ne.s32.totalorder %s75, %s77
      %p81 = scmp.eq.s32.totalorder %s20, 0
      %p82 = por %p80, %p81
      %p83 = scmp.ne.s32.totalorder %s75, %s77
      %p84 = scmp.eq.s32.totalorder %s25, 1
      %p85 = por %p83, %p84
      %p86 = scmp.ne.s32.totalorder %s77, %s78
      %p87 = scmp.eq.s32.totalorder %s25, 0
      %p88 = por %p86, %p87
      %p89 = scmp.ne.s32.totalorder %s77, %s78
      %p90 = scmp.eq.s32.totalorder %s26, 1
      %p91 = por %p89, %p90
      %p93 = scmp.ne.s32.totalorder %s78, %s92
      %p94 = scmp.eq.s32.totalorder %s26, 0
      %p95 = por %p93, %p94
      %s97 = sadd.s32 %s96, 1
      %p100 = scmp.eq.s32.totalorder %s20, 1
      %p101 = scmp.ne.s32.totalorder %s96, %s98
      %p102 = scmp.eq.s32.totalorder %s20, 0
      %p103 = por %p101, %p102
      %p104 = scmp.ne.s32.totalorder %s96, %s98
      %p105 = scmp.eq.s32.totalorder %s25, 1
      %p106 = por %p104, %p105
      %p107 = scmp.ne.s32.totalorder %s98, %s99
      %p108 = scmp.eq.s32.totalorder %s25, 0
      %p109 = por %p107, %p108
      %p110 = scmp.ne.s32.totalorder %s98, %s99
      %p111 = scmp.eq.s32.totalorder %s26, 1
      %p112 = por %p110, %p111
      %p114 = scmp.ne.s32.totalorder %s99, %s113
      %p115 = scmp.eq.s32.totalorder %s26, 0
      %p116 = por %p114, %p115
      %s118 = sadd.s32 %s117, 1
      %p121 = scmp.eq.s32.totalorder %s20, 1
      %p122 = scmp.ne.s32.totalorder %s117, %s119
      %p123 = scmp.eq.s32.totalorder %s20, 0
      %p124 = por %p122, %p123
      %p125 = scmp.ne.s32.totalorder %s117, %s119
      %p126 = scmp.eq.s32.totalorder %s25, 1
      %p127 = por %p125, %p126
      %p128 = scmp.ne.s32.totalorder %s119, %s120
      %p129 = scmp.eq.s32.totalorder %s25, 0
      %p130 = por %p128, %p129
      %p131 = scmp.ne.s32.totalorder %s119, %s120
      %p132 = scmp.eq.s32.totalorder %s26, 1
      %p133 = por %p131, %p132
      %p135 = scmp.ne.s32.totalorder %s120, %s134
      %p136 = scmp.eq.s32.totalorder %s26, 0
      %p137 = por %p135, %p136
      %s139 = sadd.s32 %s138, 1
      %p142 = scmp.eq.s32.totalorder %s20, 1
      %p143 = scmp.ne.s32.totalorder %s138, %s140
      %p144 = scmp.eq.s32.totalorder %s20, 0
      %p145 = por %p143, %p144
      %p146 = scmp.ne.s32.totalorder %s138, %s140
      %p147 = scmp.eq.s32.totalorder %s25, 1
      %p148 = por %p146, %p147
      %p149 = scmp.ne.s32.totalorder %s140, %s141
      %p150 = scmp.eq.s32.totalorder %s25, 0
      %p151 = por %p149, %p150
      %p152 = scmp.ne.s32.totalorder %s140, %s141
      %p153 = scmp.eq.s32.totalorder %s26, 1
      %p154 = por %p152, %p153
      %p156 = scmp.ne.s32.totalorder %s141, %s155
      %p157 = scmp.eq.s32.totalorder %s26, 0
      %p158 = por %p156, %p157
      %s160 = sadd.s32 %s159, 1
      %p163 = scmp.eq.s32.totalorder %s20, 1
      %p164 = scmp.ne.s32.totalorder %s159, %s161
      %p165 = scmp.eq.s32.totalorder %s20, 0
      %p166 = por %p164, %p165
      %p167 = scmp.ne.s32.totalorder %s159, %s161
      %p168 = scmp.eq.s32.totalorder %s25, 1
      %p169 = por %p167, %p168
      %p170 = scmp.ne.s32.totalorder %s161, %s162
      %p171 = scmp.eq.s32.totalorder %s25, 0
      %p172 = por %p170, %p171
      %p173 = scmp.ne.s32.totalorder %s161, %s162
      %p174 = scmp.eq.s32.totalorder %s26, 1
      %p175 = por %p173, %p174
      %p177 = scmp.ne.s32.totalorder %s162, %s176
      %p178 = scmp.eq.s32.totalorder %s26, 0
      %p179 = por %p177, %p178
      %s180 = ssub.s32 %s20, %s27
      %p181 = scmp.eq.s32.totalorder %s180, 0
      %s183 = sadd.s32 %s182, 1
      %s184 = scalar_select %p181, %s182, %s183
      %p187 = pneg %p181
      %p188 = scmp.eq.s32.totalorder %s20, 1
      %p189 = por %p187, %p188
      %p190 = scmp.ne.s32.totalorder %s182, %s185
      %p191 = scmp.eq.s32.totalorder %s20, 0
      %p192 = por %p190, %p191
      %p193 = scmp.ne.s32.totalorder %s182, %s185
      %p194 = scmp.eq.s32.totalorder %s25, 1
      %p195 = por %p193, %p194
      %p196 = scmp.ne.s32.totalorder %s185, %s186
      %p197 = scmp.eq.s32.totalorder %s25, 0
      %p198 = por %p196, %p197
      %p199 = scmp.ne.s32.totalorder %s185, %s186
      %p200 = scmp.eq.s32.totalorder %s26, 1
      %p201 = por %p199, %p200
      %p203 = scmp.ne.s32.totalorder %s186, %s202
      %p204 = scmp.eq.s32.totalorder %s26, 0
      %p205 = por %p203, %p204
      %p206 = scmp.le.s32.totalorder 1, %s20
      %p207 = scmp.lt.s32.totalorder %s20, 3
      %p208 = pnand %p206, %p207
      %p209 = pneg %p208
      // Predicated region
      $region9: #{tpu_custom_call.1} parent=5 // pred_check
        _
      $region10: #{tpu_custom_call.1} parent=5 // pred_check_branch
        %211 = sbr.rel (%p208) target = $region12
      $region11: #{tpu_custom_call.1} parent=5 // pred_region
        %s212 = ssub.s32 %s20, 1
        // Predicated region
        $region13: #{tpu_custom_call.1} parent=11 // pred_check
          %p213 = pneg %p67
        $region14: #{tpu_custom_call.1} parent=11 // pred_check_branch
          %215 = sbr.rel (%p213) target = $region16
        $region15: #{tpu_custom_call.1} parent=11 // pred_region
          %s217 = ssub.s32 2048, 2048
          %218 = vsyncadd [#allocation6], %s217
          %s219 = sshll.u32 [#allocation5], 4
          %s220 = int_to_ptr.vmem [resolvable:$true] %s219
          %225 = dma.hbm_to_vmem [thread:$0]  %s1, 2048, %s220, [#allocation6], 128, 128, 8
        $region16: #{tpu_custom_call.1} parent=11 // pred_fallthru
          _
        // Predicated region
        $region17: #{tpu_custom_call.1} parent=11 // pred_check
          %p226 = pneg %p88
        $region18: #{tpu_custom_call.1} parent=11 // pred_check_branch
          %228 = sbr.rel (%p226) target = $region20
        $region19: #{tpu_custom_call.1} parent=11 // pred_region
          _
        $region20: #{tpu_custom_call.1} parent=11 // pred_fallthru
          _
        // Predicated region
        $region21: #{tpu_custom_call.1} parent=11 // pred_check
          %p229 = pneg %p109
        $region22: #{tpu_custom_call.1} parent=11 // pred_check_branch
          %231 = sbr.rel (%p229) target = $region24
        $region23: #{tpu_custom_call.1} parent=11 // pred_region
          _
        $region24: #{tpu_custom_call.1} parent=11 // pred_fallthru
          _
        // Predicated region
        $region25: #{tpu_custom_call.1} parent=11 // pred_check
          %p232 = pneg %p130
        $region26: #{tpu_custom_call.1} parent=11 // pred_check_branch
          %234 = sbr.rel (%p232) target = $region28
        $region27: #{tpu_custom_call.1} parent=11 // pred_region
          _
        $region28: #{tpu_custom_call.1} parent=11 // pred_fallthru
          _
        // Predicated region
        $region29: #{tpu_custom_call.1} parent=11 // pred_check
          %p235 = pneg %p151
        $region30: #{tpu_custom_call.1} parent=11 // pred_check_branch
          %237 = sbr.rel (%p235) target = $region32
        $region31: #{tpu_custom_call.1} parent=11 // pred_region
          %s239 = ssub.s32 2048, 2048
          %240 = vsyncadd [#allocation6], %s239
          %s241 = sshll.u32 [#allocation7], 4
          %s242 = int_to_ptr.vmem [resolvable:$true] %s241
          %247 = dma.hbm_to_vmem [thread:$0]  %s5, 2048, %s242, [#allocation6], 128, 128, 8
        $region32: #{tpu_custom_call.1} parent=11 // pred_fallthru
          _
        // Predicated region
        $region33: #{tpu_custom_call.1} parent=11 // pred_check
          %p248 = pneg %p172
        $region34: #{tpu_custom_call.1} parent=11 // pred_check_branch
          %250 = sbr.rel (%p248) target = $region36
        $region35: #{tpu_custom_call.1} parent=11 // pred_region
          _
        $region36: #{tpu_custom_call.1} parent=11 // pred_fallthru
          _
      $region12: #{tpu_custom_call.1} parent=5 // pred_fallthru
        _
      %p251 = scmp.lt.s32.totalorder %s20, 2
      // Predicated region
      $region37: #{tpu_custom_call.1} parent=5 // pred_check
        %p252 = pneg %p251
      $region38: #{tpu_custom_call.1} parent=5 // pred_check_branch
        %254 = sbr.rel (%p252) target = $region40
      $region39: #{tpu_custom_call.1} parent=5 // pred_region
        // Predicated region
        $region41: #{tpu_custom_call.1} parent=39 // pred_check
          %p255 = pneg %p40
        $region42: #{tpu_custom_call.1} parent=39 // pred_check_branch
          %257 = sbr.rel (%p255) target = $region44
        $region43: #{tpu_custom_call.1} parent=39 // pred_region
          %s258 = sand.u32 %s30, 1
          %s259 = scalar_lea.sflag [#allocation3], %s258
          %s260 = sand.u32 %s30, 1
          %s261 = smul.addr %s260, 8
          %s262 = scalar_lea.vmem [#allocation2], %s261
          %s264 = ssub.s32 128, 128
          %265 = vsyncadd %s259, %s264
          %s266 = smul.addr %s20, 128
          %s267 = scalar_lea.hbm %s0, %s266
          %s269 = sshll.u32 %s262, 4
          %s270 = int_to_ptr.vmem [resolvable:$true] %s269
          %272 = dma.hbm_to_vmem [thread:$0]  %s267, 128, %s270, %s259
        $region44: #{tpu_custom_call.1} parent=39 // pred_fallthru
          _
      $region40: #{tpu_custom_call.1} parent=5 // pred_fallthru
        _
      %p273 = scmp.le.s32.totalorder 1, %s20
      %p274 = scmp.lt.s32.totalorder %s20, 3
      %p275 = pnand %p273, %p274
      %p276 = pneg %p275
      // Predicated region
      $region45: #{tpu_custom_call.1} parent=5 // pred_check
        _
      $region46: #{tpu_custom_call.1} parent=5 // pred_check_branch
        %278 = sbr.rel (%p275) target = $region48
      $region47: #{tpu_custom_call.1} parent=5 // pred_region
        %s279 = ssub.s32 %s20, 1
        %s280 = sand.u32 %s33, 1
        %s281 = scalar_lea.sflag [#allocation3], %s280
        %s282 = sand.u32 %s33, 1
        %s283 = smul.addr %s282, 8
        %s284 = scalar_lea.vmem [#allocation2], %s283
        // Predicated region
        $region49: #{tpu_custom_call.1} parent=47 // pred_check
          %p285 = pneg %p46
        $region50: #{tpu_custom_call.1} parent=47 // pred_check_branch
          %287 = sbr.rel (%p285) target = $region52
        $region51: #{tpu_custom_call.1} parent=47 // pred_region
          %288 = dma.done %s281, 128
        $region52: #{tpu_custom_call.1} parent=47 // pred_fallthru
          _
        // Predicated region
        $region53: #{tpu_custom_call.1} parent=47 // pred_check
          %p289 = pneg %p67
        $region54: #{tpu_custom_call.1} parent=47 // pred_check_branch
          %291 = sbr.rel (%p289) target = $region56
        $region55: #{tpu_custom_call.1} parent=47 // pred_region
          %292 = dma.done [#allocation6], 2048
        $region56: #{tpu_custom_call.1} parent=47 // pred_fallthru
          _
        // Predicated region
        $region57: #{tpu_custom_call.1} parent=47 // pred_check
          %p293 = pneg %p151
        $region58: #{tpu_custom_call.1} parent=47 // pred_check_branch
          %295 = sbr.rel (%p293) target = $region60
        $region59: #{tpu_custom_call.1} parent=47 // pred_region
          %296 = dma.done [#allocation6], 2048
        $region60: #{tpu_custom_call.1} parent=47 // pred_fallthru
          _
        %s297 = sand.u32 %s33, 1
        %s298 = scalar_lea.sflag [#allocation3], %s297
        %s299 = sand.u32 %s33, 1
        %s300 = smul.addr %s299, 8
        %s301 = scalar_lea.vmem [#allocation2], %s300
        %p302 = pneg %p46
        %p303 = pneg %p43
        %p304 = pneg %p67
        %p305 = pneg %p64
        %p306 = pneg %p88
        %p307 = pneg %p85
        %p308 = pneg %p109
        %p309 = pneg %p106
        %p310 = pneg %p130
        %p311 = pneg %p127
        %p312 = pneg %p151
        %p313 = pneg %p148
        %p314 = pneg %p172
        %p315 = pneg %p169
        %p316 = pneg %p198
        %p317 = pneg %p195
        %s318 = sand.u32 %s185, 1
        %s319 = scalar_lea.sflag [#allocation4], %s318
        %s320 = sand.u32 %s185, 1
        %s321 = smul.addr %s320, 8
        %s322 = scalar_lea.vmem [#allocation8], %s321
        %v323 = vld [vmem:[%s284] sm:$0xff]
        %v324 = vld [vmem:[#allocation5] sm:$0xff]
        %v325 = vld [vmem:[#allocation5 + $0x8] sm:$0xff]
        %v326 = vld [vmem:[#allocation5 + $0x10] sm:$0xff]
        %v327 = vld [vmem:[#allocation5 + $0x18] sm:$0xff]
        %v328 = vld [vmem:[#allocation5 + $0x20] sm:$0xff]
        %v329 = vld [vmem:[#allocation5 + $0x28] sm:$0xff]
        %v330 = vld [vmem:[#allocation5 + $0x30] sm:$0xff]
        %v331 = vld [vmem:[#allocation5 + $0x38] sm:$0xff]
        %v332 = vld [vmem:[#allocation5 + $0x40] sm:$0xff]
        %v333 = vld [vmem:[#allocation5 + $0x48] sm:$0xff]
        %v334 = vld [vmem:[#allocation5 + $0x50] sm:$0xff]
        %v335 = vld [vmem:[#allocation5 + $0x58] sm:$0xff]
        %v336 = vld [vmem:[#allocation5 + $0x60] sm:$0xff]
        %v337 = vld [vmem:[#allocation5 + $0x68] sm:$0xff]
        %v338 = vld [vmem:[#allocation5 + $0x70] sm:$0xff]
        %v339 = vld [vmem:[#allocation5 + $0x78] sm:$0xff]
        %v340 = vld [vmem:[%s2] sm:$0x1]
        %v342 = vlaneseq
        %v343 = vshrl.u32 %v342, 7
        %v344 = vsub.s32 0, %v343
        %v345 = vrot.slane %v340, %v344
        %347 = vmatprep.subr.mxu0 0.0
        %348 = vmatpush1.msra.mxu0 %v339
        %349 = vmatprep.subr.mxu0 0.0
        %350 = vmatpush1.msra.mxu0 %v338
        %351 = vmatprep.subr.mxu0 0.0
        %352 = vmatpush1.msra.mxu0 %v337
        %353 = vmatprep.subr.mxu0 0.0
        %354 = vmatpush1.msra.mxu0 %v336
        %355 = vmatprep.subr.mxu0 0.0
        %356 = vmatpush1.msra.mxu0 %v335
        %357 = vmatprep.subr.mxu0 0.0
        %358 = vmatpush1.msra.mxu0 %v334
        %359 = vmatprep.subr.mxu0 0.0
        %360 = vmatpush1.msra.mxu0 %v333
        %361 = vmatprep.subr.mxu0 0.0
        %362 = vmatpush1.msra.mxu0 %v332
        %363 = vmatprep.subr.mxu0 0.0
        %364 = vmatpush1.msra.mxu0 %v331
        %365 = vmatprep.subr.mxu0 0.0
        %366 = vmatpush1.msra.mxu0 %v330
        %367 = vmatprep.subr.mxu0 0.0
        %368 = vmatpush1.msra.mxu0 %v329
        %369 = vmatprep.subr.mxu0 0.0
        %370 = vmatpush1.msra.mxu0 %v328
        %371 = vmatprep.subr.mxu0 0.0
        %372 = vmatpush1.msra.mxu0 %v327
        %373 = vmatprep.subr.mxu0 0.0
        %374 = vmatpush1.msra.mxu0 %v326
        %375 = vmatprep.subr.mxu0 0.0
        %376 = vmatpush1.msra.mxu0 %v325
        %377 = vmatprep.subr.mxu0 0.0
        %378 = vmatpush1.msra.mxu0 %v324
        %379 = vmatprep.subr.mxu0 0.0
        %380 = vmatpush2.msra.mxu0 0.0
        %381 = vmatprep.subr.mxu0 0.0
        %382 = vmatpush2.msra.mxu0 0.0
        %383 = vmatprep.subr.mxu0 0.0
        %384 = vmatpush2.msra.mxu0 0.0
        %385 = vmatprep.subr.mxu0 0.0
        %386 = vmatpush2.msra.mxu0 0.0
        %387 = vmatprep.subr.mxu0 0.0
        %388 = vmatpush2.msra.mxu0 0.0
        %389 = vmatprep.subr.mxu0 0.0
        %390 = vmatpush2.msra.mxu0 0.0
        %391 = vmatprep.subr.mxu0 0.0
        %392 = vmatpush2.msra.mxu0 0.0
        %393 = vmatprep.subr.mxu0 0.0
        %394 = vmatpush2.msra.mxu0 0.0
        %395 = vmatprep.subr.mxu0 0.0
        %396 = vmatpush2.msra.mxu0 0.0
        %397 = vmatprep.subr.mxu0 0.0
        %398 = vmatpush2.msra.mxu0 0.0
        %399 = vmatprep.subr.mxu0 0.0
        %400 = vmatpush2.msra.mxu0 0.0
        %401 = vmatprep.subr.mxu0 0.0
        %402 = vmatpush2.msra.mxu0 0.0
        %403 = vmatprep.subr.mxu0 0.0
        %404 = vmatpush2.msra.mxu0 0.0
        %405 = vmatprep.subr.mxu0 0.0
        %406 = vmatpush2.msra.mxu0 0.0
        %407 = vmatprep.subr.mxu0 0.0
        %408 = vmatpush2.msra.mxu0 0.0
        %409 = vmatprep.subr.mxu0 0.0
        %410 = vmatpush2.msra.mxu0 0.0
        %411 = vmatprep.mubr.f32.mxu0 0.0
        %412 = vmatmul.mubr.f32.gmra.mxu0 %v323
        %v413 = vpop.f32.mrf.mxu0
        %v414 = vadd.f32 %v345, %v413
        %v415 = vpop.f32.mrf.mxu0
        %416 = vdwg.mxu0
        %v417 = vmul.f32 %v414, 0.5
        %v418 = vmul.f32 %v414, 0.70710677
        %v419 = verf.f32.pop %v418
        %v420 = vadd.f32 %v419, 1.0
        %v421 = vmul.f32 %v417, %v420
        %422 = vadd.xlane.f32.xlu0 %v421
        %v423 = vpop.xlane.xlu0 %422
        %v424 = vmul.f32 %v423, 0.015625
        %v425 = vsub.f32 %v421, %v424
        %v426 = vmul.f32 %v425, %v425
        %427 = vadd.xlane.f32.xlu0 %v426
        %v428 = vpop.xlane.xlu0 %427
        %v429 = vmul.f32 %v424, %v424
        %v430 = vmul.f32 %v429, 64.0
        %v431 = vsub.f32 %v428, %v430
        %v432 = vmul.f32 %v431, 0.015625
        %v433 = vadd.f32 %v432, 1e-05
        %v434 = vrsqrt.pop %v433
        %v435 = vmul.f32 %v425, %v434
        %v436 = vld [vmem:[%s3] sm:$0x1]
        %v438 = vlaneseq
        %v439 = vshrl.u32 %v438, 7
        %v440 = vsub.s32 0, %v439
        %v441 = vrot.slane %v436, %v440
        %v443 = vmul.f32 %v435, %v441
        %v444 = vld [vmem:[%s4] sm:$0x1]
        %v446 = vlaneseq
        %v447 = vshrl.u32 %v446, 7
        %v448 = vsub.s32 0, %v447
        %v449 = vrot.slane %v444, %v448
        %v451 = vadd.f32 %v443, %v449
        %v452 = vld [vmem:[#allocation7] sm:$0xff]
        %v453 = vld [vmem:[#allocation7 + $0x8] sm:$0xff]
        %v454 = vld [vmem:[#allocation7 + $0x10] sm:$0xff]
        %v455 = vld [vmem:[#allocation7 + $0x18] sm:$0xff]
        %v456 = vld [vmem:[#allocation7 + $0x20] sm:$0xff]
        %v457 = vld [vmem:[#allocation7 + $0x28] sm:$0xff]
        %v458 = vld [vmem:[#allocation7 + $0x30] sm:$0xff]
        %v459 = vld [vmem:[#allocation7 + $0x38] sm:$0xff]
        %v460 = vld [vmem:[#allocation7 + $0x40] sm:$0xff]
        %v461 = vld [vmem:[#allocation7 + $0x48] sm:$0xff]
        %v462 = vld [vmem:[#allocation7 + $0x50] sm:$0xff]
        %v463 = vld [vmem:[#allocation7 + $0x58] sm:$0xff]
        %v464 = vld [vmem:[#allocation7 + $0x60] sm:$0xff]
        %v465 = vld [vmem:[#allocation7 + $0x68] sm:$0xff]
        %v466 = vld [vmem:[#allocation7 + $0x70] sm:$0xff]
        %v467 = vld [vmem:[#allocation7 + $0x78] sm:$0xff]
        %v468 = vld [vmem:[%s6] sm:$0x1]
        %v470 = vlaneseq
        %v471 = vshrl.u32 %v470, 7
        %v472 = vsub.s32 0, %v471
        %v473 = vrot.slane %v468, %v472
        %475 = vmatprep.subr.mxu0 0.0
        %476 = vmatpush1.msra.mxu0 %v467
        %477 = vmatprep.subr.mxu0 0.0
        %478 = vmatpush1.msra.mxu0 %v466
        %479 = vmatprep.subr.mxu0 0.0
        %480 = vmatpush1.msra.mxu0 %v465
        %481 = vmatprep.subr.mxu0 0.0
        %482 = vmatpush1.msra.mxu0 %v464
        %483 = vmatprep.subr.mxu0 0.0
        %484 = vmatpush1.msra.mxu0 %v463
        %485 = vmatprep.subr.mxu0 0.0
        %486 = vmatpush1.msra.mxu0 %v462
        %487 = vmatprep.subr.mxu0 0.0
        %488 = vmatpush1.msra.mxu0 %v461
        %489 = vmatprep.subr.mxu0 0.0
        %490 = vmatpush1.msra.mxu0 %v460
        %491 = vmatprep.subr.mxu0 0.0
        %492 = vmatpush1.msra.mxu0 %v459
        %493 = vmatprep.subr.mxu0 0.0
        %494 = vmatpush1.msra.mxu0 %v458
        %495 = vmatprep.subr.mxu0 0.0
        %496 = vmatpush1.msra.mxu0 %v457
        %497 = vmatprep.subr.mxu0 0.0
        %498 = vmatpush1.msra.mxu0 %v456
        %499 = vmatprep.subr.mxu0 0.0
        %500 = vmatpush1.msra.mxu0 %v455
        %501 = vmatprep.subr.mxu0 0.0
        %502 = vmatpush1.msra.mxu0 %v454
        %503 = vmatprep.subr.mxu0 0.0
        %504 = vmatpush1.msra.mxu0 %v453
        %505 = vmatprep.subr.mxu0 0.0
        %506 = vmatpush1.msra.mxu0 %v452
        %507 = vmatprep.subr.mxu0 0.0
        %508 = vmatpush2.msra.mxu0 0.0
        %509 = vmatprep.subr.mxu0 0.0
        %510 = vmatpush2.msra.mxu0 0.0
        %511 = vmatprep.subr.mxu0 0.0
        %512 = vmatpush2.msra.mxu0 0.0
        %513 = vmatprep.subr.mxu0 0.0
        %514 = vmatpush2.msra.mxu0 0.0
        %515 = vmatprep.subr.mxu0 0.0
        %516 = vmatpush2.msra.mxu0 0.0
        %517 = vmatprep.subr.mxu0 0.0
        %518 = vmatpush2.msra.mxu0 0.0
        %519 = vmatprep.subr.mxu0 0.0
        %520 = vmatpush2.msra.mxu0 0.0
        %521 = vmatprep.subr.mxu0 0.0
        %522 = vmatpush2.msra.mxu0 0.0
        %523 = vmatprep.subr.mxu0 0.0
        %524 = vmatpush2.msra.mxu0 0.0
        %525 = vmatprep.subr.mxu0 0.0
        %526 = vmatpush2.msra.mxu0 0.0
        %527 = vmatprep.subr.mxu0 0.0
        %528 = vmatpush2.msra.mxu0 0.0
        %529 = vmatprep.subr.mxu0 0.0
        %530 = vmatpush2.msra.mxu0 0.0
        %531 = vmatprep.subr.mxu0 0.0
        %532 = vmatpush2.msra.mxu0 0.0
        %533 = vmatprep.subr.mxu0 0.0
        %534 = vmatpush2.msra.mxu0 0.0
        %535 = vmatprep.subr.mxu0 0.0
        %536 = vmatpush2.msra.mxu0 0.0
        %537 = vmatprep.subr.mxu0 0.0
        %538 = vmatpush2.msra.mxu0 0.0
        %539 = vmatprep.mubr.f32.mxu0 0.0
        %540 = vmatmul.mubr.f32.gmra.mxu0 %v451
        %v541 = vpop.f32.mrf.mxu0
        %v542 = vadd.f32 %v473, %v541
        %v543 = vpop.f32.mrf.mxu0
        %544 = vdwg.mxu0
        %545 = vst [vmem:[%s322] sm:$0xff] %v542
        %s546 = sand.u32 %s185, 1
        %s547 = scalar_lea.sflag [#allocation4], %s546
        %s548 = sand.u32 %s185, 1
        %s549 = smul.addr %s548, 8
        %s550 = scalar_lea.vmem [#allocation8], %s549
        // Predicated region
        $region61: #{tpu_custom_call.1} parent=47 // pred_check
          %p551 = pneg %p195
        $region62: #{tpu_custom_call.1} parent=47 // pred_check_branch
          %553 = sbr.rel (%p551) target = $region64
        $region63: #{tpu_custom_call.1} parent=47 // pred_region
          %s555 = ssub.s32 128, 128
          %556 = vsyncadd %s547, %s555
          %s557 = smul.addr %s25, 128
          %s558 = scalar_lea.hbm %s7, %s557
          %s560 = sshll.u32 %s550, 4
          %s561 = int_to_ptr.vmem [resolvable:$true] %s560
          %563 = dma.vmem_to_hbm [thread:$0]  %s561, 128, %s558, %s547
        $region64: #{tpu_custom_call.1} parent=47 // pred_fallthru
          _
      $region48: #{tpu_custom_call.1} parent=5 // pred_fallthru
        _
      %p564 = scmp.le.s32.totalorder 2, %s20
      // Predicated region
      $region65: #{tpu_custom_call.1} parent=5 // pred_check
        %p565 = pneg %p564
      $region66: #{tpu_custom_call.1} parent=5 // pred_check_branch
        %567 = sbr.rel (%p565) target = $region68
      $region67: #{tpu_custom_call.1} parent=5 // pred_region
        %s568 = ssub.s32 %s20, 2
        // Predicated region
        $region69: #{tpu_custom_call.1} parent=67 // pred_check
          %p569 = pneg %p201
        $region70: #{tpu_custom_call.1} parent=67 // pred_check_branch
          %571 = sbr.rel (%p569) target = $region72
        $region71: #{tpu_custom_call.1} parent=67 // pred_region
          %s572 = sand.u32 %s186, 1
          %s573 = scalar_lea.sflag [#allocation4], %s572
          %s574 = sand.u32 %s186, 1
          %s575 = smul.addr %s574, 8
          %s576 = scalar_lea.vmem [#allocation8], %s575
          %577 = dma.done %s573, 128
        $region72: #{tpu_custom_call.1} parent=67 // pred_fallthru
          _
      $region68: #{tpu_custom_call.1} parent=5 // pred_fallthru
        _
    $region6: #{tpu_custom_call.1} parent=1 // loop_footer
      %s24 = sadd.s32 1, %s20
    $region7: #{tpu_custom_call.1} parent=1 // loop_footer_branch
      %19 = sbr.rel target = $region3
    $region8: #{tpu_custom_call.1} parent=1 // loop_exit
      _
    %578 = vsyncpa [#allocation3], 1
    %s579 = scalar_lea.sflag [#allocation3], 1
    %580 = vsyncpa %s579, 1
    %581 = vsyncpa [#allocation6], 1
    %582 = vsyncpa [#allocation4], 1
    %s583 = scalar_lea.sflag [#allocation4], 1
    %584 = vsyncpa %s583, 1

</llo_original>
